<compile_context>
chip_gen: v5e
topology: v5e:2x2
jax: 0.10.0
libtpu: 0.0.40
codegen_flags: <defaults>
</compile_context>

<pallas_src>
import math
import functools

import jax
import jax.numpy as jnp
from jax.experimental import pallas as pl
from jax.experimental.pallas import tpu as pltpu

_EPS_HSV = 1e-8
_EPS_LUV = 1e-12
_LANE = 128


def _safe_pow(x, p):
    # x >= 0 assumed.  Matches torch.pow for x > 0 and returns 0 at x == 0.
    return jnp.where(x > 0.0, jnp.exp(p * jnp.log(jnp.maximum(x, 1e-30))), 0.0)


# ---- per-pixel color math (pure jnp; used both inside the kernel and for reference) ----

def _rgb_to_hsv(r, g, b):
    # kornia.color.rgb_to_hsv semantics (hue in radians, [0, 2*pi))
    mx = jnp.maximum(jnp.maximum(r, g), b)
    mn = jnp.minimum(jnp.minimum(r, g), b)
    deltac = mx - mn
    v = mx
    s = deltac / (mx + _EPS_HSV)
    dc = jnp.where(deltac == 0.0, jnp.ones_like(deltac), deltac)
    rc, gc, bc = mx - r, mx - g, mx - b
    h1 = bc - gc
    h2 = (rc - bc) + 2.0 * dc
    h3 = (gc - rc) + 4.0 * dc
    # torch.gather on argmax over channels: first max (r, then g, then b) wins
    h = jnp.where(mx == r, h1, jnp.where(mx == g, h2, h3))
    h = h / dc
    h = (h / 6.0) % 1.0
    h = 2.0 * math.pi * h
    return h, s, v


def _rgb_to_xyz(r, g, b):
    # kornia.color.rgb_to_xyz (kept as VPU FMAs on purpose; 3x3 is not MXU work)
    x = 0.412453 * r + 0.357580 * g + 0.180423 * b
    y = 0.212671 * r + 0.715160 * g + 0.072169 * b
    z = 0.019334 * r + 0.119193 * g + 0.950227 * b
    return x, y, z


def _rgb_to_luv(r, g, b):
    # kornia.color.rgb_to_luv (sRGB -> linear RGB -> XYZ -> LUV, D65 white)
    def lin(c):
        return jnp.where(c > 0.04045, _safe_pow((c + 0.055) / 1.055, 2.4), c / 12.92)

    rl, gl, bl = lin(r), lin(g), lin(b)
    x, y, z = _rgb_to_xyz(rl, gl, bl)
    threshold = 0.008856
    L = jnp.where(
        y > threshold,
        116.0 * _safe_pow(jnp.maximum(y, 0.0), 1.0 / 3.0) - 16.0,
        903.3 * y,
    )
    xw, yw, zw = 0.95047, 1.0, 1.08883
    denom_w = xw + 15.0 * yw + 3.0 * zw
    u_w = (4.0 * xw) / denom_w
    v_w = (9.0 * yw) / denom_w
    denom = x + 15.0 * y + 3.0 * z + _EPS_LUV
    u_p = (4.0 * x) / denom
    v_p = (9.0 * y) / denom
    u = 13.0 * L * (u_p - u_w)
    v = 13.0 * L * (v_p - v_w)
    return L, u, v


_CONVERTERS = {"hsv": _rgb_to_hsv, "xyz": _rgb_to_xyz, "luv": _rgb_to_luv}


# ---- Pallas kernel ----

def _color_kernel(x_ref, o_ref, *, space, num_channels):
    # Refs: (C, r_block, 128) in the input dtype (leading batch dim squeezed).
    # Read channels directly from the ref -> dense (r_block, 128) f32 tiles.
    r = x_ref[0].astype(jnp.float32)
    g = x_ref[1].astype(jnp.float32)
    b = x_ref[2].astype(jnp.float32)
    c0, c1, c2 = _CONVERTERS[space](r, g, b)
    # full-vreg, lane-dense per-channel stores
    o_ref[0] = c0.astype(o_ref.dtype)
    o_ref[1] = c1.astype(o_ref.dtype)
    o_ref[2] = c2.astype(o_ref.dtype)
    # passthrough channels fused into the same kernel (single read / write of x)
    for c in range(3, num_channels):
        o_ref[c] = x_ref[c]


def _pick_row_block(R, C, itemsize, N, target_block_bytes):
    """Rows-of-128 per block: ~target bytes per input block, sublane-aligned,
    with enough grid steps to keep both v7x TensorCores busy."""
    sub = 8 if itemsize >= 4 else (16 if itemsize == 2 else 32)
    if R <= sub:
        return R  # full extent (allowed even if not a multiple of `sub`)
    r_block = max(sub, (target_block_bytes // (C * _LANE * itemsize)) // sub * sub)
    min_steps = 8
    if N * pl.cdiv(R, r_block) < min_steps:
        want_blocks = min(pl.cdiv(min_steps, N), pl.cdiv(R, sub))
        r_block = pl.cdiv(pl.cdiv(R, want_blocks), sub) * sub
    if r_block >= R:
        r_block = R
    return r_block


def dvr_color_to_space(x, *, enable: bool, space: str, target_block_bytes: int = 2 << 20):
    """JAX/Pallas equivalent of DvrColorToSpace(enable, space).forward(x); x is NCHW."""
    space = space.lower()
    assert space in ("rgb", "hsv", "xyz", "luv")
    if not enable or space == "rgb":
        return x

    N, C, H, W = x.shape
    assert C >= 3
    HW = H * W

    # Lane-align the spatial axis only (to a 128 multiple); free when HW % 128 == 0.
    hw_pad = (-HW) % _LANE
    R = (HW + hw_pad) // _LANE
    if hw_pad:
        x4 = jnp.pad(x.reshape(N, C, HW), ((0, 0), (0, 0), (0, hw_pad)))
        x4 = x4.reshape(N, C, R, _LANE)
    else:
        x4 = x.reshape(N, C, R, _LANE)

    itemsize = jnp.dtype(x.dtype).itemsize
    r_block = _pick_row_block(R, C, itemsize, N, target_block_bytes)
    num_row_blocks = pl.cdiv(R, r_block)  # partial last block handled by masking

    kernel = functools.partial(_color_kernel, space=space, num_channels=C)
    block = (pl.Squeezed(), C, r_block, _LANE)
    out = pl.pallas_call(
        kernel,
        out_shape=jax.ShapeDtypeStruct((N, C, R, _LANE), x.dtype),
        grid_spec=pltpu.PrefetchScalarGridSpec(
            num_scalar_prefetch=0,
            grid=(N, num_row_blocks),
            in_specs=[pl.BlockSpec(block, lambda n, t: (n, 0, t, 0))],
            out_specs=pl.BlockSpec(block, lambda n, t: (n, 0, t, 0)),
        ),
        compiler_params=pltpu.CompilerParams(
            dimension_semantics=("parallel", "parallel")
        ),
    )(x4)

    if hw_pad:
        out = out.reshape(N, C, R * _LANE)[:, :, :HW]
    return out.reshape(N, C, H, W)


# ---- pure-JAX reference for verification ----

def _reference(x, space):
    xf = x.astype(jnp.float32)
    r, g, b = xf[:, 0], xf[:, 1], xf[:, 2]
    c0, c1, c2 = _CONVERTERS[space](r, g, b)
    conv = jnp.stack([c0, c1, c2], axis=1)
    return jnp.concatenate([conv, xf[:, 3:]], axis=1).astype(x.dtype)


if __name__ == "__main__":
    key = jax.random.PRNGKey(0)
    # DVR image: batch=2, 4 channels (RGB + alpha/extra), 16x16 spatial, NCHW.
    x = jax.random.uniform(key, (2, 4, 16, 16), dtype=jnp.float32)

    # enable=False path (identity)
    y_id = dvr_color_to_space(x, enable=False, space="hsv")
    assert jnp.allclose(y_id, x)

    for space in ("hsv", "xyz", "luv"):
        y = dvr_color_to_space(x, enable=True, space=space)
        y = jax.block_until_ready(y)
        ref = _reference(x, space)
        assert y.shape == x.shape and y.dtype == x.dtype
        assert jnp.allclose(y, ref, atol=1e-4, rtol=1e-4), f"mismatch for space={space}"

    # spatial size NOT divisible by 128 -> exercises the 128-lane padding path
    x2 = jax.random.uniform(jax.random.PRNGKey(1), (1, 4, 10, 10), dtype=jnp.float32)
    y2 = jax.block_until_ready(dvr_color_to_space(x2, enable=True, space="hsv"))
    assert jnp.allclose(y2, _reference(x2, "hsv"), atol=1e-4, rtol=1e-4)

    # C=3 (no passthrough) + R not divisible by the row block -> masked partial block
    x3 = jax.random.uniform(jax.random.PRNGKey(2), (1, 3, 52, 52), dtype=jnp.float32)
    y3 = jax.block_until_ready(dvr_color_to_space(x3, enable=True, space="luv"))
    assert jnp.allclose(y3, _reference(x3, "luv"), atol=1e-4, rtol=1e-4)

    print("KERNEL_OK")
</pallas_src>

<mosaic_0001>
module attributes {stable_mosaic.version = 11 : i64} {
  func.func @_color_kernel(%arg0: i32, %arg1: i32, %arg2: memref<1x4x2x128xf32, #tpu.memory_space<vmem>>, %arg3: memref<1x4x2x128xf32, #tpu.memory_space<vmem>>) attributes {dimension_semantics = [#tpu.dimension_semantics<parallel>, #tpu.dimension_semantics<parallel>], iteration_bounds = array<i64: 2, 1>, scalar_prefetch = 0 : i64, scratch_operands = 0 : i64, tpu.core_type = #tpu.core_type<tc>, window_params = [{transform_indices = @transform_0, window_bounds = array<i64: 1, 4, 2, 128>}, {transform_indices = @transform_1, window_bounds = array<i64: 1, 4, 2, 128>}]} {
    %c0 = arith.constant 0 : index
    %c0_0 = arith.constant 0 : index
    %c0_1 = arith.constant 0 : index
    %c0_2 = arith.constant 0 : index
    %0 = vector.load %arg2[%c0, %c0_0, %c0_1, %c0_2] : memref<1x4x2x128xf32, #tpu.memory_space<vmem>>, vector<1x1x2x128xf32>
    %1 = vector.shape_cast %0 : vector<1x1x2x128xf32> to vector<2x128xf32>
    %c0_3 = arith.constant 0 : index
    %c1 = arith.constant 1 : index
    %c0_4 = arith.constant 0 : index
    %c0_5 = arith.constant 0 : index
    %2 = vector.load %arg2[%c0_3, %c1, %c0_4, %c0_5] : memref<1x4x2x128xf32, #tpu.memory_space<vmem>>, vector<1x1x2x128xf32>
    %3 = vector.shape_cast %2 : vector<1x1x2x128xf32> to vector<2x128xf32>
    %c0_6 = arith.constant 0 : index
    %c2 = arith.constant 2 : index
    %c0_7 = arith.constant 0 : index
    %c0_8 = arith.constant 0 : index
    %4 = vector.load %arg2[%c0_6, %c2, %c0_7, %c0_8] : memref<1x4x2x128xf32, #tpu.memory_space<vmem>>, vector<1x1x2x128xf32>
    %5 = vector.shape_cast %4 : vector<1x1x2x128xf32> to vector<2x128xf32>
    %6 = arith.maximumf %1, %3 : vector<2x128xf32>
    %7 = arith.maximumf %6, %5 : vector<2x128xf32>
    %8 = arith.minimumf %1, %3 : vector<2x128xf32>
    %9 = arith.minimumf %8, %5 : vector<2x128xf32>
    %10 = arith.subf %7, %9 : vector<2x128xf32>
    %cst = arith.constant 9.99999993E-9 : f32
    %11 = vector.broadcast %cst : f32 to vector<2x128xf32>
    %12 = arith.addf %7, %11 : vector<2x128xf32>
    %13 = arith.divf %10, %12 : vector<2x128xf32>
    %cst_9 = arith.constant 0.000000e+00 : f32
    %14 = vector.broadcast %cst_9 : f32 to vector<2x128xf32>
    %15 = arith.cmpf oeq, %10, %14 : vector<2x128xf32>
    %cst_10 = arith.constant 1.000000e+00 : f32
    %16 = vector.broadcast %cst_10 : f32 to vector<2x128xf32>
    %17 = arith.select %15, %16, %10 : vector<2x128xi1>, vector<2x128xf32>
    %18 = arith.subf %7, %1 : vector<2x128xf32>
    %19 = arith.subf %7, %3 : vector<2x128xf32>
    %20 = arith.subf %7, %5 : vector<2x128xf32>
    %21 = arith.subf %20, %19 : vector<2x128xf32>
    %22 = arith.subf %18, %20 : vector<2x128xf32>
    %cst_11 = arith.constant 2.000000e+00 : f32
    %23 = vector.broadcast %cst_11 : f32 to vector<2x128xf32>
    %24 = arith.mulf %23, %17 : vector<2x128xf32>
    %25 = arith.addf %22, %24 : vector<2x128xf32>
    %26 = arith.subf %19, %18 : vector<2x128xf32>
    %cst_12 = arith.constant 4.000000e+00 : f32
    %27 = vector.broadcast %cst_12 : f32 to vector<2x128xf32>
    %28 = arith.mulf %27, %17 : vector<2x128xf32>
    %29 = arith.addf %26, %28 : vector<2x128xf32>
    %30 = arith.cmpf oeq, %7, %1 : vector<2x128xf32>
    %31 = arith.cmpf oeq, %7, %3 : vector<2x128xf32>
    %32 = arith.select %31, %25, %29 : vector<2x128xi1>, vector<2x128xf32>
    %33 = arith.select %30, %21, %32 : vector<2x128xi1>, vector<2x128xf32>
    %34 = arith.divf %33, %17 : vector<2x128xf32>
    %cst_13 = arith.constant 6.000000e+00 : f32
    %35 = vector.broadcast %cst_13 : f32 to vector<2x128xf32>
    %36 = arith.divf %34, %35 : vector<2x128xf32>
    %cst_14 = arith.constant 1.000000e+00 : f32
    %37 = vector.broadcast %cst_14 : f32 to vector<2x128xf32>
    %38 = arith.remf %36, %37 : vector<2x128xf32>
    %cst_15 = arith.constant 0.000000e+00 : f32
    %39 = vector.broadcast %cst_15 : f32 to vector<2x128xf32>
    %40 = arith.cmpf one, %38, %39 : vector<2x128xf32>
    %cst_16 = arith.constant 0.000000e+00 : f32
    %41 = vector.broadcast %cst_16 : f32 to vector<2x128xf32>
    %42 = arith.cmpf olt, %38, %41 : vector<2x128xf32>
    %cst_17 = arith.constant 0.000000e+00 : f32
    %43 = arith.cmpf olt, %cst_14, %cst_17 : f32
    %44 = vector.broadcast %43 : i1 to vector<2x128xi1>
    %45 = vector.broadcast %44 : vector<2x128xi1> to vector<2x128xi1>
    %46 = arith.xori %42, %45 : vector<2x128xi1>
    %47 = arith.andi %46, %40 : vector<2x128xi1>
    %48 = vector.broadcast %cst_14 : f32 to vector<2x128xf32>
    %49 = arith.addf %38, %48 : vector<2x128xf32>
    %50 = arith.select %47, %49, %38 : vector<2x128xi1>, vector<2x128xf32>
    %cst_18 = arith.constant 6.28318548 : f32
    %51 = vector.broadcast %cst_18 : f32 to vector<2x128xf32>
    %52 = arith.mulf %51, %50 : vector<2x128xf32>
    %c0_19 = arith.constant 0 : index
    %c0_20 = arith.constant 0 : index
    %c0_21 = arith.constant 0 : index
    %c0_22 = arith.constant 0 : index
    %53 = vector.load %arg3[%c0_19, %c0_20, %c0_21, %c0_22] : memref<1x4x2x128xf32, #tpu.memory_space<vmem>>, vector<1x1x2x128xf32>
    %54 = vector.shape_cast %53 : vector<1x1x2x128xf32> to vector<2x128xf32>
    %55 = vector.shape_cast %52 : vector<2x128xf32> to vector<1x1x2x128xf32>
    tpu.vector_store %arg3[%c0_19, %c0_20, %c0_21, %c0_22], %55 {strides = array<i32>} : memref<1x4x2x128xf32, #tpu.memory_space<vmem>>, vector<1x1x2x128xf32>,
    %c0_23 = arith.constant 0 : index
    %c1_24 = arith.constant 1 : index
    %c0_25 = arith.constant 0 : index
    %c0_26 = arith.constant 0 : index
    %56 = vector.load %arg3[%c0_23, %c1_24, %c0_25, %c0_26] : memref<1x4x2x128xf32, #tpu.memory_space<vmem>>, vector<1x1x2x128xf32>
    %57 = vector.shape_cast %56 : vector<1x1x2x128xf32> to vector<2x128xf32>
    %58 = vector.shape_cast %13 : vector<2x128xf32> to vector<1x1x2x128xf32>
    tpu.vector_store %arg3[%c0_23, %c1_24, %c0_25, %c0_26], %58 {strides = array<i32>} : memref<1x4x2x128xf32, #tpu.memory_space<vmem>>, vector<1x1x2x128xf32>,
    %c0_27 = arith.constant 0 : index
    %c2_28 = arith.constant 2 : index
    %c0_29 = arith.constant 0 : index
    %c0_30 = arith.constant 0 : index
    %59 = vector.load %arg3[%c0_27, %c2_28, %c0_29, %c0_30] : memref<1x4x2x128xf32, #tpu.memory_space<vmem>>, vector<1x1x2x128xf32>
    %60 = vector.shape_cast %59 : vector<1x1x2x128xf32> to vector<2x128xf32>
    %61 = vector.shape_cast %7 : vector<2x128xf32> to vector<1x1x2x128xf32>
    tpu.vector_store %arg3[%c0_27, %c2_28, %c0_29, %c0_30], %61 {strides = array<i32>} : memref<1x4x2x128xf32, #tpu.memory_space<vmem>>, vector<1x1x2x128xf32>,
    %c0_31 = arith.constant 0 : index
    %c3 = arith.constant 3 : index
    %c0_32 = arith.constant 0 : index
    %c0_33 = arith.constant 0 : index
    %62 = vector.load %arg2[%c0_31, %c3, %c0_32, %c0_33] : memref<1x4x2x128xf32, #tpu.memory_space<vmem>>, vector<1x1x2x128xf32>
    %63 = vector.shape_cast %62 : vector<1x1x2x128xf32> to vector<2x128xf32>
    %c0_34 = arith.constant 0 : index
    %c3_35 = arith.constant 3 : index
    %c0_36 = arith.constant 0 : index
    %c0_37 = arith.constant 0 : index
    %64 = vector.load %arg3[%c0_34, %c3_35, %c0_36, %c0_37] : memref<1x4x2x128xf32, #tpu.memory_space<vmem>>, vector<1x1x2x128xf32>
    %65 = vector.shape_cast %64 : vector<1x1x2x128xf32> to vector<2x128xf32>
    %66 = vector.shape_cast %63 : vector<2x128xf32> to vector<1x1x2x128xf32>
    tpu.vector_store %arg3[%c0_34, %c3_35, %c0_36, %c0_37], %66 {strides = array<i32>} : memref<1x4x2x128xf32, #tpu.memory_space<vmem>>, vector<1x1x2x128xf32>,
    return
  }
  func.func @transform_0(%arg0: i32, %arg1: i32) -> (i32, i32, i32, i32) {
    %c0_i32 = arith.constant 0 : i32
    %c0_i32_0 = arith.constant 0 : i32
    %c0_i32_1 = arith.constant 0 : i32
    return %arg0, %c0_i32, %arg1, %c0_i32_0 : i32, i32, i32, i32
  }
  func.func @transform_1(%arg0: i32, %arg1: i32) -> (i32, i32, i32, i32) {
    %c0_i32 = arith.constant 0 : i32
    %c0_i32_0 = arith.constant 0 : i32
    %c0_i32_1 = arith.constant 0 : i32
    return %arg0, %c0_i32, %arg1, %c0_i32_0 : i32, i32, i32, i32
  }
}

</mosaic_0001>

<llo_original>
// kernel: tpu_custom_call.1
$region0: #{tpu_custom_call.1}
  #allocation0 [shape = 'u32[]', space=smem, size = 0x4, offset = 0x4, fixed_abs, tag = 'smem constant byte address 0x4 - core index']
  #allocation1 [shape = 'u32[72,128]{1,0:T(1,128)}', space=vmem, size = 0x9000, scoped, tag = 'internal scratch']
  %s0 = inlined_call_operand.hbm [shape: f32[2,4,2,128], index: 0, kind: input, shape index: {}]
  %s1 = inlined_call_operand.hbm [shape: f32[2,4,2,128], index: 1, kind: output, shape index: {}]
  %s2 = sld [smem:[#allocation0]]
  $region41: #{tpu_custom_call.1} parent=0
    _
  %s4 = ssub.s32 1, %s2
  %s5 = scalar_select 0, %s4, %s2
  $region1: #{tpu_custom_call.1} parent=0
    #allocation2 [shape = 'u8[8192]{0}', space=vmem, size = 0x2000, scoped, tag = 'input window, operand 0']
    #allocation3 [shape = 's32[2]{0}', space=sflag, size = 0x8, scoped, tag = 'scoped memory for tpu_custom_call.1']
    #allocation4 [shape = 's32[2]{0}', space=sflag, size = 0x8, scoped, tag = 'scoped memory for tpu_custom_call.1']
    #allocation5 [shape = 'u8[8192]{0}', space=vmem, size = 0x2000, scoped, tag = 'output window, operand 0']
    %6 = vsyncpa [#allocation3], 0
    %s7 = scalar_lea.sflag [#allocation3], 1
    %8 = vsyncpa %s7, 0
    %9 = vsyncpa [#allocation4], 0
    %s10 = scalar_lea.sflag [#allocation4], 1
    %11 = vsyncpa %s10, 0
    loop: start=0, step=1, limit=4
    $region2: #{tpu_custom_call.1} parent=1 // loop_pre_header
      _
    $region3: #{tpu_custom_call.1} parent=1 // loop_header
      %s13 = sphi 0, %s17
      %p14 = scmp.ge.s32.totalorder %s13, 4
      %s20 = sphi 0, %s32
      %s21 = sphi 0, %s28
      %s22 = sphi 0, %s20
      %s23 = sphi 0, %s21
      %s24 = sphi 0, %s22
      %s25 = sphi 0, %s23
      %s37 = sphi 0, %s39
      %s40 = sphi 0, %s37
      %s41 = sphi 0, %s40
      %s57 = sphi 0, %s41
      %s65 = sphi 0, %s67
      %s68 = sphi 0, %s65
      %s69 = sphi 0, %s68
      %s85 = sphi 0, %s69
    $region4: #{tpu_custom_call.1} parent=1 // loop_header_branch
      %16 = sbr.rel (%p14) target = $region8
    $region5: #{tpu_custom_call.1} parent=1 // loop_body
      %s18 = ssub.s32 %s13, 1
      %s19 = ssub.s32 %s13, 2
      %s26 = sadd.s32 1, %s21
      %p27 = scmp.ge.s32.totalorder %s26, 1
      %s28 = scalar_select %p27, 0, %s26
      %s29 = sadd.s32 1, %s20
      %s30 = scalar_select %p27, %s29, %s20
      %p31 = scmp.ge.s32.totalorder %s30, 2
      %s32 = scalar_select %p31, 0, %s30
      %s33 = ssub.s32 %s20, %s32
      %s34 = ssub.s32 %s21, %s28
      %s35 = sor.u32 %s33, %s34
      %p36 = scmp.eq.s32.totalorder %s35, 0
      %s38 = sadd.s32 %s37, 1
      %s39 = scalar_select %p36, %s37, %s38
      %p42 = pneg %p36
      %p43 = scmp.eq.s32.totalorder %s13, 1
      %p44 = por %p42, %p43
      %p45 = scmp.ne.s32.totalorder %s37, %s40
      %p46 = scmp.eq.s32.totalorder %s13, 0
      %p47 = por %p45, %p46
      %p48 = scmp.ne.s32.totalorder %s37, %s40
      %p49 = scmp.eq.s32.totalorder %s18, 1
      %p50 = por %p48, %p49
      %p51 = scmp.ne.s32.totalorder %s40, %s41
      %p52 = scmp.eq.s32.totalorder %s18, 0
      %p53 = por %p51, %p52
      %p54 = scmp.ne.s32.totalorder %s40, %s41
      %p55 = scmp.eq.s32.totalorder %s19, 1
      %p56 = por %p54, %p55
      %p58 = scmp.ne.s32.totalorder %s41, %s57
      %p59 = scmp.eq.s32.totalorder %s19, 0
      %p60 = por %p58, %p59
      %s61 = ssub.s32 %s20, %s32
      %s62 = ssub.s32 %s21, %s28
      %s63 = sor.u32 %s61, %s62
      %p64 = scmp.eq.s32.totalorder %s63, 0
      %s66 = sadd.s32 %s65, 1
      %s67 = scalar_select %p64, %s65, %s66
      %p70 = pneg %p64
      %p71 = scmp.eq.s32.totalorder %s13, 1
      %p72 = por %p70, %p71
      %p73 = scmp.ne.s32.totalorder %s65, %s68
      %p74 = scmp.eq.s32.totalorder %s13, 0
      %p75 = por %p73, %p74
      %p76 = scmp.ne.s32.totalorder %s65, %s68
      %p77 = scmp.eq.s32.totalorder %s18, 1
      %p78 = por %p76, %p77
      %p79 = scmp.ne.s32.totalorder %s68, %s69
      %p80 = scmp.eq.s32.totalorder %s18, 0
      %p81 = por %p79, %p80
      %p82 = scmp.ne.s32.totalorder %s68, %s69
      %p83 = scmp.eq.s32.totalorder %s19, 1
      %p84 = por %p82, %p83
      %p86 = scmp.ne.s32.totalorder %s69, %s85
      %p87 = scmp.eq.s32.totalorder %s19, 0
      %p88 = por %p86, %p87
      %p89 = scmp.le.s32.totalorder 1, %s13
      %p90 = scmp.lt.s32.totalorder %s13, 3
      %p91 = pnand %p89, %p90
      %p92 = pneg %p91
      // Predicated region
      $region9: #{tpu_custom_call.1} parent=5 // pred_check
        _
      $region10: #{tpu_custom_call.1} parent=5 // pred_check_branch
        %94 = sbr.rel (%p91) target = $region12
      $region11: #{tpu_custom_call.1} parent=5 // pred_region
        %s95 = ssub.s32 %s13, 1
      $region12: #{tpu_custom_call.1} parent=5 // pred_fallthru
        _
      %p96 = scmp.lt.s32.totalorder %s13, 2
      // Predicated region
      $region13: #{tpu_custom_call.1} parent=5 // pred_check
        %p97 = pneg %p96
      $region14: #{tpu_custom_call.1} parent=5 // pred_check_branch
        %99 = sbr.rel (%p97) target = $region16
      $region15: #{tpu_custom_call.1} parent=5 // pred_region
        // Predicated region
        $region17: #{tpu_custom_call.1} parent=15 // pred_check
          %p100 = pneg %p47
        $region18: #{tpu_custom_call.1} parent=15 // pred_check_branch
          %102 = sbr.rel (%p100) target = $region20
        $region19: #{tpu_custom_call.1} parent=15 // pred_region
          %s103 = sand.u32 %s37, 1
          %s104 = scalar_lea.sflag [#allocation3], %s103
          %s105 = sand.u32 %s37, 1
          %s106 = smul.addr %s105, 8
          %s107 = scalar_lea.vmem [#allocation2], %s106
          %109 = vsyncadd %s104, 0
          %s110 = smul.addr %s20, 4
          %s111 = sadd.s32 %s21, %s110
          %s112 = smul.addr %s111, 2
          %s113 = scalar_lea.hbm %s0, %s112
          %s114 = sshll.u32 %s113, 4
          %s115 = int_to_ptr.hbm [resolvable:$true] %s114
          %s116 = sshll.u32 %s107, 4
          %s117 = int_to_ptr.vmem [resolvable:$true] %s116
          %122 = dma.hbm_to_vmem [thread:$0]  %s115, 128, %s117, %s104, 32, 32, 2
        $region20: #{tpu_custom_call.1} parent=15 // pred_fallthru
          _
      $region16: #{tpu_custom_call.1} parent=5 // pred_fallthru
        _
      %p123 = scmp.le.s32.totalorder 1, %s13
      %p124 = scmp.lt.s32.totalorder %s13, 3
      %p125 = pnand %p123, %p124
      %p126 = pneg %p125
      // Predicated region
      $region21: #{tpu_custom_call.1} parent=5 // pred_check
        _
      $region22: #{tpu_custom_call.1} parent=5 // pred_check_branch
        %128 = sbr.rel (%p125) target = $region24
      $region23: #{tpu_custom_call.1} parent=5 // pred_region
        %s129 = ssub.s32 %s13, 1
        %s130 = sand.u32 %s40, 1
        %s131 = scalar_lea.sflag [#allocation3], %s130
        %s132 = sand.u32 %s40, 1
        %s133 = smul.addr %s132, 8
        %s134 = scalar_lea.vmem [#allocation2], %s133
        // Predicated region
        $region25: #{tpu_custom_call.1} parent=23 // pred_check
          %p135 = pneg %p53
        $region26: #{tpu_custom_call.1} parent=23 // pred_check_branch
          %137 = sbr.rel (%p135) target = $region28
        $region27: #{tpu_custom_call.1} parent=23 // pred_region
          %139 = dma.done %s131, 128
        $region28: #{tpu_custom_call.1} parent=23 // pred_fallthru
          _
        %s140 = sand.u32 %s40, 1
        %s141 = scalar_lea.sflag [#allocation3], %s140
        %s142 = sand.u32 %s40, 1
        %s143 = smul.addr %s142, 8
        %s144 = scalar_lea.vmem [#allocation2], %s143
        %p145 = pneg %p53
        %p146 = pneg %p50
        %p147 = pneg %p81
        %p148 = pneg %p78
        %s149 = sand.u32 %s68, 1
        %s150 = scalar_lea.sflag [#allocation4], %s149
        %s151 = sand.u32 %s68, 1
        %s152 = smul.addr %s151, 8
        %s153 = scalar_lea.vmem [#allocation5], %s152
        %v154 = vld [vmem:[%s134] sm:$0x3]
        %s155 = scalar_lea.vmem %s134, 2 [#allocation2]
        %v156 = vld [vmem:[%s155] sm:$0x3]
        %s157 = scalar_lea.vmem %s134, 4 [#allocation2]
        %v158 = vld [vmem:[%s157] sm:$0x3]
        %v159 = vmax.f32 %v154, %v156
        %v160 = vmax.f32 %v159, %v158
        %v161 = vmin.f32 %v154, %v156
        %v162 = vmin.f32 %v161, %v158
        %v163 = vsub.f32 %v160, %v162
        %v164 = vadd.f32 %v160, 1e-08
        %v165 = vrcp.pop %v164
        %v166 = vmul.f32 %v164, %v165
        %v167 = vsub.f32 1.0, %v166
        %v168 = vmul.f32 %v165, %v167
        %v169 = vadd.f32 %v165, %v168
        %vm170 = vweird.f32 %v164
        %vm171 = vweird.f32 %v165
        %vm172 = vmor %vm170, %vm171
        %v173 = vsel %vm172, %v165, %v169
        %v174 = vand.u32 2147483647, %v164
        %vm175 = vcmp.eq.f32.partialorder %v174, 8.507059e+37
        %v176 = vand.u32 %v164, 2147483648
        %v177 = vor.u32 1.1754944e-38, %v176
        %v178 = vsel %vm175, %v177, %v173
        %v179 = vmul.f32 %v163, %v178
        %vm180 = vcmp.eq.f32.partialorder %v163, 0.0
        %v181 = vsel %vm180, 1.0, %v163
        %v182 = vsub.f32 %v160, %v154
        %v183 = vsub.f32 %v160, %v156
        %v184 = vsub.f32 %v160, %v158
        %v185 = vsub.f32 %v184, %v183
        %v186 = vsub.f32 %v182, %v184
        %v187 = vmul.f32 %v181, 2.0
        %v188 = vadd.f32 %v186, %v187
        %v189 = vsub.f32 %v183, %v182
        %v190 = vmul.f32 %v181, 4.0
        %v191 = vadd.f32 %v189, %v190
        %vm192 = vcmp.eq.f32.partialorder %v160, %v154
        %vm193 = vcmp.eq.f32.partialorder %v160, %v156
        %v194 = vsel %vm193, %v188, %v191
        %v195 = vsel %vm192, %v185, %v194
        %v196 = vrcp.pop %v181
        %v197 = vmul.f32 %v181, %v196
        %v198 = vsub.f32 1.0, %v197
        %v199 = vmul.f32 %v196, %v198
        %v200 = vadd.f32 %v196, %v199
        %vm201 = vweird.f32 %v181
        %vm202 = vweird.f32 %v196
        %vm203 = vmor %vm201, %vm202
        %v204 = vsel %vm203, %v196, %v200
        %v205 = vand.u32 2147483647, %v181
        %vm206 = vcmp.eq.f32.partialorder %v205, 8.507059e+37
        %v207 = vand.u32 %v181, 2147483648
        %v208 = vor.u32 1.1754944e-38, %v207
        %v209 = vsel %vm206, %v208, %v204
        %v210 = vmul.f32 %v195, %v209
        %v211 = vrcp.pop 6.0
        %v212 = vmul.f32 6.0, %v211
        %v213 = vsub.f32 1.0, %v212
        %v214 = vmul.f32 %v211, %v213
        %v215 = vadd.f32 %v211, %v214
        %vm216 = vweird.f32 %v211
        %v217 = vsel %vm216, %v211, %v215
        %v218 = vmul.f32 %v210, %v217
        %v219 = vand.u32 2147483647, %v218
        %v220 = vrcp.pop 1.0
        %v221 = vsub.f32 1.0, %v220
        %v222 = vmul.f32 %v220, %v221
        %v223 = vadd.f32 %v220, %v222
        %vm224 = vweird.f32 %v220
        %v225 = vsel %vm224, %v220, %v223
        %v226 = vmul.f32 %v219, %v225
        %v227 = vfloor.f32 %v226
        %v228 = vsub.f32 %v219, %v227
        %vm229 = vcmp.eq.f32.partialorder %v228, 1.0
        %v230 = vsel %vm229, 0.0, %v228
        %v231 = vand.u32 2147483647, %v230
        %v232 = vand.u32 %v218, 2147483648
        %v233 = vor.u32 %v231, %v232
        %vm234 = vcmp.ne.f32.partialorder %v233, 0.0
        %vm235 = vcmp.lt.f32.partialorder %v233, 0.0
        %vm236 = vmand %vm235, %vm234
        %v237 = vadd.f32 %v233, 1.0
        %v238 = vsel %vm236, %v237, %v233
        %v239 = vmul.f32 %v238, 6.2831855
        %240 = vst [vmem:[%s153] sm:$0x3] %v239
        %s241 = scalar_lea.vmem %s153, 2 [#allocation5]
        %242 = vst [vmem:[%s241] sm:$0x3] %v179
        %s243 = scalar_lea.vmem %s153, 4 [#allocation5]
        %244 = vst [vmem:[%s243] sm:$0x3] %v160
        %s245 = scalar_lea.vmem %s134, 6 [#allocation2]
        %v246 = vld [vmem:[%s245] sm:$0x3]
        %s247 = scalar_lea.vmem %s153, 6 [#allocation5]
        %248 = vst [vmem:[%s247] sm:$0x3] %v246
        %s249 = sand.u32 %s68, 1
        %s250 = scalar_lea.sflag [#allocation4], %s249
        %s251 = sand.u32 %s68, 1
        %s252 = smul.addr %s251, 8
        %s253 = scalar_lea.vmem [#allocation5], %s252
        // Predicated region
        $region29: #{tpu_custom_call.1} parent=23 // pred_check
          %p254 = pneg %p78
        $region30: #{tpu_custom_call.1} parent=23 // pred_check_branch
          %256 = sbr.rel (%p254) target = $region32
        $region31: #{tpu_custom_call.1} parent=23 // pred_region
          %258 = vsyncadd %s250, 0
          %s259 = smul.addr %s22, 4
          %s260 = sadd.s32 %s23, %s259
          %s261 = smul.addr %s260, 2
          %s262 = scalar_lea.hbm %s1, %s261
          %s263 = sshll.u32 %s253, 4
          %s264 = int_to_ptr.vmem [resolvable:$true] %s263
          %s265 = sshll.u32 %s262, 4
          %s266 = int_to_ptr.hbm [resolvable:$true] %s265
          %271 = dma.vmem_to_hbm [thread:$0]  %s264, 128, %s266, %s250, 32, 32, 2
        $region32: #{tpu_custom_call.1} parent=23 // pred_fallthru
          _
      $region24: #{tpu_custom_call.1} parent=5 // pred_fallthru
        _
      %p272 = scmp.le.s32.totalorder 2, %s13
      // Predicated region
      $region33: #{tpu_custom_call.1} parent=5 // pred_check
        %p273 = pneg %p272
      $region34: #{tpu_custom_call.1} parent=5 // pred_check_branch
        %275 = sbr.rel (%p273) target = $region36
      $region35: #{tpu_custom_call.1} parent=5 // pred_region
        %s276 = ssub.s32 %s13, 2
        // Predicated region
        $region37: #{tpu_custom_call.1} parent=35 // pred_check
          %p277 = pneg %p84
        $region38: #{tpu_custom_call.1} parent=35 // pred_check_branch
          %279 = sbr.rel (%p277) target = $region40
        $region39: #{tpu_custom_call.1} parent=35 // pred_region
          %s280 = sand.u32 %s69, 1
          %s281 = scalar_lea.sflag [#allocation4], %s280
          %s282 = sand.u32 %s69, 1
          %s283 = smul.addr %s282, 8
          %s284 = scalar_lea.vmem [#allocation5], %s283
          %286 = dma.done %s281, 128
        $region40: #{tpu_custom_call.1} parent=35 // pred_fallthru
          _
      $region36: #{tpu_custom_call.1} parent=5 // pred_fallthru
        _
    $region6: #{tpu_custom_call.1} parent=1 // loop_footer
      %s17 = sadd.s32 1, %s13
    $region7: #{tpu_custom_call.1} parent=1 // loop_footer_branch
      %12 = sbr.rel target = $region3
    $region8: #{tpu_custom_call.1} parent=1 // loop_exit
      _
    %287 = vsyncpa [#allocation3], 1
    %s288 = scalar_lea.sflag [#allocation3], 1
    %289 = vsyncpa %s288, 1
    %290 = vsyncpa [#allocation4], 1
    %s291 = scalar_lea.sflag [#allocation4], 1
    %292 = vsyncpa %s291, 1

</llo_original>
